<compile_context>
chip_gen: v6e
topology: v6e:2x2x1
jax: 0.10.0
libtpu: 0.0.40
codegen_flags: <defaults>
</compile_context>

<pallas_src>
import jax
import jax.numpy as jnp
from jax.experimental import pallas as pl
from jax.experimental.pallas import tpu as pltpu

# acti_func constants: `a, b, c` are undefined module-level globals in the
# reference source; fixed deterministically here (b < c, alpha stays in [0, 1]).
A_CONST = 0.1
B_CONST = 0.2
C_CONST = 0.8


def _elu(x):
    # PyTorch F.elu (alpha=1.0).  exp is clamped at 0 so large positive
    # pre-activations never produce a transient inf in the discarded branch.
    return jnp.where(x > 0, x, jnp.exp(jnp.minimum(x, 0.0)) - 1.0)


def adapls_loss_kernel(px_ref, py_ref, x_ref, y_ref, w0x_ref, w0y_ref, b0_ref,
                       w1_ref, b1_ref, w2_ref, b2_ref, loss_ref,
                       xall_ref, yall_ref):
    # px/py: (N,) int32 in SMEM            -- resample permutations
    # x: (N, x_dim)  y: (N, y_dim)         -- raw samples (VMEM)
    # w0x: (x_dim, H)  w0y: (y_dim, H)  b0: (1, H)   -- H = 128 (padded from 100)
    # w1: (H, H)  b1: (1, H)
    # w2: (1, H) output weight row, b2: (1, 1) scalar in SMEM
    # loss_ref: (1, 1) f32 in SMEM
    # xall/yall: (2N, x_dim) / (2N, y_dim) f32 VMEM scratch
    n, _ = x_ref.shape
    two_n = 2 * n

    # ---- assemble the fused (2N, d) batch: rows [0,N)=joint, [N,2N)=margin ---
    xall_ref[0:n, :] = x_ref[...].astype(jnp.float32)
    yall_ref[0:n, :] = y_ref[...].astype(jnp.float32)

    # resample(): real O(N) row gather driven by SMEM indices (no (N,N) one-hot,
    # no quadratic VMEM/MXU cost).
    @pl.loop(0, n)
    def _(i):
        pxi = px_ref[i]
        pyi = py_ref[i]
        xall_ref[pl.ds(n + i, 1), :] = x_ref[pl.ds(pxi, 1), :].astype(jnp.float32)
        yall_ref[pl.ds(n + i, 1), :] = y_ref[pl.ds(pyi, 1), :].astype(jnp.float32)

    x_all = xall_ref[...]                      # (2N, x_dim)
    y_all = yall_ref[...]                      # (2N, y_dim)

    # ---- MLP: single fused pass over all 2N rows -----------------------------
    # Layer 0 with w0 pre-split (avoids non-8-aligned sublane slicing of w0).
    h = (jnp.dot(x_all, w0x_ref[...], preferred_element_type=jnp.float32)
         + jnp.dot(y_all, w0y_ref[...], preferred_element_type=jnp.float32)
         + b0_ref[...])
    h = _elu(h)
    h = _elu(jnp.dot(h, w1_ref[...], preferred_element_type=jnp.float32)
             + b1_ref[...])
    # Output head: VPU multiply + lane reduce against the (1, H) weight row.
    logits = jnp.sum(h * w2_ref[...], axis=-1, keepdims=True) + b2_ref[0, 0]  # (2N,1)

    # ---- adaptive-label-smoothing BCE epilogue (single pass, single reduce) --
    def bce_sum(lg, labels):
        p = jax.nn.sigmoid(lg)
        # acti_func(p, a, b, c): piecewise adaptive smoothing coefficient.
        alpha = jnp.where(
            p <= B_CONST, -A_CONST * p / B_CONST + A_CONST,
            jnp.where(p >= C_CONST,
                      A_CONST * p / (1.0 - C_CONST)
                      + A_CONST * C_CONST / (C_CONST - 1.0),
                      jnp.zeros_like(p)))
        # smooth_ce_loss: new_labels = (1-alpha)*label + alpha/2
        new_l = (1.0 - alpha) * labels + 0.5 * alpha
        # nn.BCELoss clamps log terms at -100 (PyTorch semantics).
        log_p = jnp.maximum(jnp.log(p), -100.0)
        log_1mp = jnp.maximum(jnp.log(1.0 - p), -100.0)
        return jnp.sum(-(new_l * log_p + (1.0 - new_l) * log_1mp))

    if two_n % 128 == 0:
        # Lane-dense epilogue for large N: (2N,1) -> (2N/128,128) so the EUP
        # (sigmoid/log) and VPU (alpha/BCE) ops run at full lane utilization.
        r = two_n // 128
        lg = logits.reshape(r, 128)
        row = jax.lax.broadcasted_iota(jnp.int32, (r, 128), 0)
        lane = jax.lax.broadcasted_iota(jnp.int32, (r, 128), 1)
        labels = ((row * 128 + lane) < n).astype(jnp.float32)
        total = bce_sum(lg, labels)
    else:
        # Small-N path (e.g. the reference N=8): column layout is fine.
        ridx = jax.lax.broadcasted_iota(jnp.int32, (two_n, 1), 0)
        labels = (ridx < n).astype(jnp.float32)
        total = bce_sum(logits, labels)

    loss_ref[0, 0] = total * (1.0 / two_n)


def adapls_forward(x_samples, y_samples, params, perm_key):
    """AdapLS.forward: returns the scalar smoothed-BCE loss."""
    n, x_dim = x_samples.shape
    y_dim = y_samples.shape[1]
    kx, ky = jax.random.split(perm_key)

    # resample(..., replace=False) == random permutation of the rows.
    # Only the *indices* leave JAX; the gather happens inside the kernel.
    perm_x = jax.random.permutation(kx, n).astype(jnp.int32)
    perm_y = jax.random.permutation(ky, n).astype(jnp.int32)

    w0x, w0y, b0, w1, b1, w2_row, b2 = params
    vmem = pl.BlockSpec(memory_space=pltpu.MemorySpace.VMEM)
    smem = pl.BlockSpec(memory_space=pltpu.MemorySpace.SMEM)

    out = pl.pallas_call(
        adapls_loss_kernel,
        out_shape=jax.ShapeDtypeStruct((1, 1), jnp.float32),
        in_specs=[smem, smem,                               # perm_x, perm_y
                  vmem, vmem,                               # x, y
                  vmem, vmem, vmem, vmem, vmem, vmem,       # w0x, w0y, b0, w1, b1, w2
                  smem],                                    # b2 scalar
        out_specs=smem,
        scratch_shapes=[pltpu.VMEM((2 * n, x_dim), jnp.float32),
                        pltpu.VMEM((2 * n, y_dim), jnp.float32)],
    )(perm_x, perm_y, x_samples, y_samples, w0x, w0y, b0, w1, b1, w2_row, b2)
    return out[0, 0]


if __name__ == "__main__":
    key = jax.random.PRNGKey(0)
    kx, ky, kw0, kw1, kw2, kperm = jax.random.split(key, 6)

    # AdapLS(x_dim=4, y_dim=4, hidden_size=2) -> AdapLSNet(input_size=8,
    # hidden_layers=2, hidden_size=100, sigma=0.02)
    x_dim, y_dim, n, hidden = 4, 4, 8, 100
    H = 128  # lane-padded hidden width (bit-exact: ELU(0)=0, zero rows/cols)

    x_samples = jax.random.normal(kx, (n, x_dim), jnp.float32)
    y_samples = jax.random.normal(ky, (n, y_dim), jnp.float32)

    # nn.init.normal_(std=0.02) on weights, zero biases.  Weights stored as
    # (in, out) so the kernel computes x @ W + b (== torch x @ W.T + b),
    # zero-padded from hidden=100 to H=128, and w0 pre-split into its x / y
    # row blocks so the kernel never slices a tile at an unaligned offset.
    w0_full = 0.02 * jax.random.normal(kw0, (x_dim + y_dim, hidden), jnp.float32)
    w0x = jnp.zeros((x_dim, H), jnp.float32).at[:, :hidden].set(w0_full[:x_dim])
    w0y = jnp.zeros((y_dim, H), jnp.float32).at[:, :hidden].set(w0_full[x_dim:])
    b0 = jnp.zeros((1, H), jnp.float32)
    w1 = jnp.zeros((H, H), jnp.float32).at[:hidden, :hidden].set(
        0.02 * jax.random.normal(kw1, (hidden, hidden), jnp.float32))
    b1 = jnp.zeros((1, H), jnp.float32)
    # Output layer stored as a (1, H) row (used as VPU multiply + lane reduce).
    w2_row = jnp.zeros((1, H), jnp.float32).at[:, :hidden].set(
        0.02 * jax.random.normal(kw2, (1, hidden), jnp.float32))
    b2 = jnp.zeros((1, 1), jnp.float32)

    loss = adapls_forward(x_samples, y_samples,
                          (w0x, w0y, b0, w1, b1, w2_row, b2), kperm)
    jax.block_until_ready(loss)
    print("KERNEL_OK")
</pallas_src>

<mosaic_0001>
module attributes {stable_mosaic.version = 11 : i64} {
  func.func @adapls_loss_kernel(%arg0: memref<8xi32, #tpu.memory_space<smem>>, %arg1: memref<8xi32, #tpu.memory_space<smem>>, %arg2: memref<8x4xf32, #tpu.memory_space<vmem>>, %arg3: memref<8x4xf32, #tpu.memory_space<vmem>>, %arg4: memref<4x128xf32, #tpu.memory_space<vmem>>, %arg5: memref<4x128xf32, #tpu.memory_space<vmem>>, %arg6: memref<1x128xf32, #tpu.memory_space<vmem>>, %arg7: memref<128x128xf32, #tpu.memory_space<vmem>>, %arg8: memref<1x128xf32, #tpu.memory_space<vmem>>, %arg9: memref<1x128xf32, #tpu.memory_space<vmem>>, %arg10: memref<1x1xf32, #tpu.memory_space<smem>>, %arg11: memref<1x1xf32, #tpu.memory_space<smem>>, %arg12: memref<16x4xf32, #tpu.memory_space<vmem>>, %arg13: memref<16x4xf32, #tpu.memory_space<vmem>>) attributes {dimension_semantics = [], scalar_prefetch = 0 : i64, scratch_operands = 2 : i64, tpu.core_type = #tpu.core_type<tc>} {
    %c0 = arith.constant 0 : index
    %c0_0 = arith.constant 0 : index
    %0 = vector.load %arg2[%c0, %c0_0] : memref<8x4xf32, #tpu.memory_space<vmem>>, vector<8x4xf32>
    %c0_1 = arith.constant 0 : index
    %c0_2 = arith.constant 0 : index
    %1 = vector.load %arg12[%c0_1, %c0_2] : memref<16x4xf32, #tpu.memory_space<vmem>>, vector<8x4xf32>
    tpu.vector_store %arg12[%c0_1, %c0_2], %0 {strides = array<i32>} : memref<16x4xf32, #tpu.memory_space<vmem>>, vector<8x4xf32>,
    %c0_3 = arith.constant 0 : index
    %c0_4 = arith.constant 0 : index
    %2 = vector.load %arg3[%c0_3, %c0_4] : memref<8x4xf32, #tpu.memory_space<vmem>>, vector<8x4xf32>
    %c0_5 = arith.constant 0 : index
    %c0_6 = arith.constant 0 : index
    %3 = vector.load %arg13[%c0_5, %c0_6] : memref<16x4xf32, #tpu.memory_space<vmem>>, vector<8x4xf32>
    tpu.vector_store %arg13[%c0_5, %c0_6], %2 {strides = array<i32>} : memref<16x4xf32, #tpu.memory_space<vmem>>, vector<8x4xf32>,
    %c0_i32 = arith.constant 0 : i32
    %c8_i32 = arith.constant 8 : i32
    %4 = arith.addi %c0_i32, %c8_i32 : i32
    %c1_i32 = arith.constant 1 : i32
    scf.for %arg14 = %c0_i32 to %4 step %c1_i32  : i32 {
      %c1_i32_57 = arith.constant 1 : i32
      %100 = arith.muli %arg14, %c1_i32_57 : i32
      %c0_i32_58 = arith.constant 0 : i32
      %101 = arith.addi %c0_i32_58, %100 : i32
      %102 = arith.index_cast %101 : i32 to index
      %103 = memref.load %arg0[%102] : memref<8xi32, #tpu.memory_space<smem>>
      %104 = arith.index_cast %101 : i32 to index
      %105 = memref.load %arg1[%104] : memref<8xi32, #tpu.memory_space<smem>>
      %106 = arith.index_cast %103 : i32 to index
      %c0_59 = arith.constant 0 : index
      %107 = vector.load %arg2[%106, %c0_59] : memref<8x4xf32, #tpu.memory_space<vmem>>, vector<1x4xf32>
      %c8_i32_60 = arith.constant 8 : i32
      %108 = arith.addi %c8_i32_60, %101 : i32
      %109 = arith.index_cast %108 : i32 to index
      %c0_61 = arith.constant 0 : index
      %110 = vector.load %arg12[%109, %c0_61] : memref<16x4xf32, #tpu.memory_space<vmem>>, vector<1x4xf32>
      tpu.vector_store %arg12[%109, %c0_61], %107 {strides = array<i32>} : memref<16x4xf32, #tpu.memory_space<vmem>>, vector<1x4xf32>,
      %111 = arith.index_cast %105 : i32 to index
      %c0_62 = arith.constant 0 : index
      %112 = vector.load %arg3[%111, %c0_62] : memref<8x4xf32, #tpu.memory_space<vmem>>, vector<1x4xf32>
      %c8_i32_63 = arith.constant 8 : i32
      %113 = arith.addi %c8_i32_63, %101 : i32
      %114 = arith.index_cast %113 : i32 to index
      %c0_64 = arith.constant 0 : index
      %115 = vector.load %arg13[%114, %c0_64] : memref<16x4xf32, #tpu.memory_space<vmem>>, vector<1x4xf32>
      tpu.vector_store %arg13[%114, %c0_64], %112 {strides = array<i32>} : memref<16x4xf32, #tpu.memory_space<vmem>>, vector<1x4xf32>,
    }
    %c8_i32_7 = arith.constant 8 : i32
    %c0_8 = arith.constant 0 : index
    %c0_9 = arith.constant 0 : index
    %5 = vector.load %arg12[%c0_8, %c0_9] : memref<16x4xf32, #tpu.memory_space<vmem>>, vector<16x4xf32>
    %c0_10 = arith.constant 0 : index
    %c0_11 = arith.constant 0 : index
    %6 = vector.load %arg13[%c0_10, %c0_11] : memref<16x4xf32, #tpu.memory_space<vmem>>, vector<16x4xf32>
    %c0_12 = arith.constant 0 : index
    %c0_13 = arith.constant 0 : index
    %7 = vector.load %arg4[%c0_12, %c0_13] : memref<4x128xf32, #tpu.memory_space<vmem>>, vector<4x128xf32>
    %cst = arith.constant dense<0.000000e+00> : vector<16x128xf32>
    %8 = tpu.matmul %5, %7, %cst {dimension_numbers = #tpu.dot_dimension_numbers<[1], [0], [0], [1], [0, 0, 1, 1], [], []>} : vector<16x4xf32>, vector<4x128xf32>, vector<16x128xf32> -> vector<16x128xf32>
    %c0_14 = arith.constant 0 : index
    %c0_15 = arith.constant 0 : index
    %9 = vector.load %arg5[%c0_14, %c0_15] : memref<4x128xf32, #tpu.memory_space<vmem>>, vector<4x128xf32>
    %cst_16 = arith.constant dense<0.000000e+00> : vector<16x128xf32>
    %10 = tpu.matmul %6, %9, %cst_16 {dimension_numbers = #tpu.dot_dimension_numbers<[1], [0], [0], [1], [0, 0, 1, 1], [], []>} : vector<16x4xf32>, vector<4x128xf32>, vector<16x128xf32> -> vector<16x128xf32>
    %11 = arith.addf %8, %10 : vector<16x128xf32>
    %c0_17 = arith.constant 0 : index
    %c0_18 = arith.constant 0 : index
    %12 = vector.load %arg6[%c0_17, %c0_18] : memref<1x128xf32, #tpu.memory_space<vmem>>, vector<1x128xf32>
    %13 = vector.broadcast %12 : vector<1x128xf32> to vector<16x128xf32>
    %14 = arith.addf %11, %13 : vector<16x128xf32>
    %cst_19 = arith.constant 0.000000e+00 : f32
    %15 = vector.broadcast %cst_19 : f32 to vector<16x128xf32>
    %16 = arith.cmpf ogt, %14, %15 : vector<16x128xf32>
    %cst_20 = arith.constant 0.000000e+00 : f32
    %17 = vector.broadcast %cst_20 : f32 to vector<16x128xf32>
    %18 = arith.minimumf %14, %17 : vector<16x128xf32>
    %19 = math.exp %18 : vector<16x128xf32>
    %cst_21 = arith.constant 1.000000e+00 : f32
    %20 = vector.broadcast %cst_21 : f32 to vector<16x128xf32>
    %21 = arith.subf %19, %20 : vector<16x128xf32>
    %22 = arith.select %16, %14, %21 : vector<16x128xi1>, vector<16x128xf32>
    %c0_22 = arith.constant 0 : index
    %c0_23 = arith.constant 0 : index
    %23 = vector.load %arg7[%c0_22, %c0_23] : memref<128x128xf32, #tpu.memory_space<vmem>>, vector<128x128xf32>
    %cst_24 = arith.constant dense<0.000000e+00> : vector<16x128xf32>
    %24 = tpu.matmul %22, %23, %cst_24 {dimension_numbers = #tpu.dot_dimension_numbers<[1], [0], [0], [1], [0, 0, 1, 1], [], []>} : vector<16x128xf32>, vector<128x128xf32>, vector<16x128xf32> -> vector<16x128xf32>
    %c0_25 = arith.constant 0 : index
    %c0_26 = arith.constant 0 : index
    %25 = vector.load %arg8[%c0_25, %c0_26] : memref<1x128xf32, #tpu.memory_space<vmem>>, vector<1x128xf32>
    %26 = vector.broadcast %25 : vector<1x128xf32> to vector<16x128xf32>
    %27 = arith.addf %24, %26 : vector<16x128xf32>
    %cst_27 = arith.constant 0.000000e+00 : f32
    %28 = vector.broadcast %cst_27 : f32 to vector<16x128xf32>
    %29 = arith.cmpf ogt, %27, %28 : vector<16x128xf32>
    %cst_28 = arith.constant 0.000000e+00 : f32
    %30 = vector.broadcast %cst_28 : f32 to vector<16x128xf32>
    %31 = arith.minimumf %27, %30 : vector<16x128xf32>
    %32 = math.exp %31 : vector<16x128xf32>
    %cst_29 = arith.constant 1.000000e+00 : f32
    %33 = vector.broadcast %cst_29 : f32 to vector<16x128xf32>
    %34 = arith.subf %32, %33 : vector<16x128xf32>
    %35 = arith.select %29, %27, %34 : vector<16x128xi1>, vector<16x128xf32>
    %c0_30 = arith.constant 0 : index
    %c0_31 = arith.constant 0 : index
    %36 = vector.load %arg9[%c0_30, %c0_31] : memref<1x128xf32, #tpu.memory_space<vmem>>, vector<1x128xf32>
    %37 = vector.broadcast %36 : vector<1x128xf32> to vector<16x128xf32>
    %38 = arith.mulf %35, %37 : vector<16x128xf32>
    %cst_32 = arith.constant dense<0.000000e+00> : vector<16xf32>
    %39 = vector.multi_reduction <add>, %38, %cst_32 [1] : vector<16x128xf32> to vector<16xf32>
    %40 = vector.shape_cast %39 : vector<16xf32> to vector<16x1xf32>
    %c0_33 = arith.constant 0 : index
    %c0_34 = arith.constant 0 : index
    %41 = memref.load %arg10[%c0_33, %c0_34] : memref<1x1xf32, #tpu.memory_space<smem>>
    %42 = vector.broadcast %41 : f32 to vector<16x1xf32>
    %43 = arith.addf %40, %42 : vector<16x1xf32>
    %44 = tpu.iota {dimensions = array<i32: 0>} : vector<16x1xi32>
    %c8_i32_35 = arith.constant 8 : i32
    %45 = vector.broadcast %c8_i32_35 : i32 to vector<16x1xi32>
    %46 = arith.cmpi slt, %44, %45 : vector<16x1xi32>
    %47 = arith.extui %46 : vector<16x1xi1> to vector<16x1xi32>
    %48 = arith.sitofp %47 : vector<16x1xi32> to vector<16x1xf32>
    %49 = arith.negf %43 : vector<16x1xf32>
    %50 = math.exp %49 : vector<16x1xf32>
    %cst_36 = arith.constant 1.000000e+00 : f32
    %51 = vector.broadcast %cst_36 : f32 to vector<16x1xf32>
    %52 = arith.addf %51, %50 : vector<16x1xf32>
    %53 = arith.divf %51, %52 : vector<16x1xf32>
    %cst_37 = arith.constant 2.000000e-01 : f32
    %54 = vector.broadcast %cst_37 : f32 to vector<16x1xf32>
    %55 = arith.cmpf ole, %53, %54 : vector<16x1xf32>
    %cst_38 = arith.constant -1.000000e-01 : f32
    %56 = vector.broadcast %cst_38 : f32 to vector<16x1xf32>
    %57 = arith.mulf %56, %53 : vector<16x1xf32>
    %cst_39 = arith.constant 2.000000e-01 : f32
    %58 = vector.broadcast %cst_39 : f32 to vector<16x1xf32>
    %59 = arith.divf %57, %58 : vector<16x1xf32>
    %cst_40 = arith.constant 1.000000e-01 : f32
    %60 = vector.broadcast %cst_40 : f32 to vector<16x1xf32>
    %61 = arith.addf %59, %60 : vector<16x1xf32>
    %cst_41 = arith.constant 8.000000e-01 : f32
    %62 = vector.broadcast %cst_41 : f32 to vector<16x1xf32>
    %63 = arith.cmpf oge, %53, %62 : vector<16x1xf32>
    %cst_42 = arith.constant 1.000000e-01 : f32
    %64 = vector.broadcast %cst_42 : f32 to vector<16x1xf32>
    %65 = arith.mulf %64, %53 : vector<16x1xf32>
    %cst_43 = arith.constant 2.000000e-01 : f32
    %66 = vector.broadcast %cst_43 : f32 to vector<16x1xf32>
    %67 = arith.divf %65, %66 : vector<16x1xf32>
    %cst_44 = arith.constant -4.000000e-01 : f32
    %68 = vector.broadcast %cst_44 : f32 to vector<16x1xf32>
    %69 = arith.addf %67, %68 : vector<16x1xf32>
    %cst_45 = arith.constant 0.000000e+00 : f32
    %70 = vector.broadcast %cst_45 : f32 to vector<16x1xf32>
    %71 = arith.select %63, %69, %70 : vector<16x1xi1>, vector<16x1xf32>
    %72 = arith.select %55, %61, %71 : vector<16x1xi1>, vector<16x1xf32>
    %cst_46 = arith.constant 1.000000e+00 : f32
    %73 = vector.broadcast %cst_46 : f32 to vector<16x1xf32>
    %74 = arith.subf %73, %72 : vector<16x1xf32>
    %75 = arith.mulf %74, %48 : vector<16x1xf32>
    %cst_47 = arith.constant 5.000000e-01 : f32
    %76 = vector.broadcast %cst_47 : f32 to vector<16x1xf32>
    %77 = arith.mulf %76, %72 : vector<16x1xf32>
    %78 = arith.addf %75, %77 : vector<16x1xf32>
    %79 = math.log %53 : vector<16x1xf32>
    %cst_48 = arith.constant -1.000000e+02 : f32
    %80 = vector.broadcast %cst_48 : f32 to vector<16x1xf32>
    %81 = arith.maximumf %79, %80 : vector<16x1xf32>
    %cst_49 = arith.constant 1.000000e+00 : f32
    %82 = vector.broadcast %cst_49 : f32 to vector<16x1xf32>
    %83 = arith.subf %82, %53 : vector<16x1xf32>
    %84 = math.log %83 : vector<16x1xf32>
    %cst_50 = arith.constant -1.000000e+02 : f32
    %85 = vector.broadcast %cst_50 : f32 to vector<16x1xf32>
    %86 = arith.maximumf %84, %85 : vector<16x1xf32>
    %87 = arith.mulf %78, %81 : vector<16x1xf32>
    %cst_51 = arith.constant 1.000000e+00 : f32
    %88 = vector.broadcast %cst_51 : f32 to vector<16x1xf32>
    %89 = arith.subf %88, %78 : vector<16x1xf32>
    %90 = arith.mulf %89, %86 : vector<16x1xf32>
    %91 = arith.addf %87, %90 : vector<16x1xf32>
    %cst_52 = arith.constant 0.000000e+00 : f32
    %92 = vector.broadcast %cst_52 : f32 to vector<16x1xf32>
    %93 = arith.subf %92, %91 : vector<16x1xf32>
    %94 = vector.shape_cast %93 : vector<16x1xf32> to vector<1x16x1xf32>
    %cst_53 = arith.constant dense<0.000000e+00> : vector<1xf32>
    %95 = vector.multi_reduction <add>, %94, %cst_53 [1, 2] : vector<1x16x1xf32> to vector<1xf32>
    %96 = vector.shape_cast %95 : vector<1xf32> to vector<1x1x1xf32>
    %97 = vector.extract %96[0, 0, 0] : f32 from vector<1x1x1xf32>
    %cst_54 = arith.constant 6.250000e-02 : f32
    %98 = arith.mulf %97, %cst_54 : f32
    %c0_55 = arith.constant 0 : index
    %c0_56 = arith.constant 0 : index
    %99 = memref.load %arg11[%c0_55, %c0_56] : memref<1x1xf32, #tpu.memory_space<smem>>
    memref.store %98, %arg11[%c0_55, %c0_56] : memref<1x1xf32, #tpu.memory_space<smem>>
    return
  }
}

</mosaic_0001>

<llo_original>
// kernel: tpu_custom_call.1
$region0: #{tpu_custom_call.1}
  #allocation0 [shape = 'u32[]', space=smem, size = 0x4, offset = 0x4, fixed_abs, tag = 'smem constant byte address 0x4 - core index']
  #allocation1 [shape = 'u32[144,128]{1,0:T(1,128)}', space=vmem, size = 0x12000, scoped, tag = 'internal scratch']
  #allocation2 [shape = 'f32[16,4]{1,0:T(8,128)}', space=vmem, size = 0x2000, scoped, tag = 'scratch operand']
  #allocation3 [shape = 'f32[16,4]{1,0:T(8,128)}', space=vmem, size = 0x2000, scoped, tag = 'scratch operand']
  #allocation4 [shape = 'f32[1,1]{1,0:T(1,128)S(6)}', space=smem, size = 0x200, scoped, tag = 'scoped memory for tpu_custom_call.1']
  %s0 = inlined_call_operand.vmem [shape: s32[8], index: 0, kind: input, shape index: {}]
  %s1 = inlined_call_operand.vmem [shape: s32[8], index: 1, kind: input, shape index: {}]
  %s2 = inlined_call_operand.vmem [shape: f32[8,4], index: 2, kind: input, shape index: {}]
  %s3 = inlined_call_operand.vmem [shape: f32[8,4], index: 3, kind: input, shape index: {}]
  %s4 = inlined_call_operand.vmem [shape: f32[4,128], index: 4, kind: input, shape index: {}]
  %s5 = inlined_call_operand.vmem [shape: f32[4,128], index: 5, kind: input, shape index: {}]
  %s6 = inlined_call_operand.vmem [shape: f32[1,128], index: 6, kind: input, shape index: {}]
  %s7 = inlined_call_operand.hbm [shape: f32[128,128], index: 7, kind: input, shape index: {}]
  %s8 = inlined_call_operand.vmem [shape: f32[1,128], index: 8, kind: input, shape index: {}]
  %s9 = inlined_call_operand.vmem [shape: f32[1,128], index: 9, kind: input, shape index: {}]
  %s10 = inlined_call_operand.<no memory space> [shape: f32[1,1], index: 10, kind: input, shape index: {}]
  %s11 = inlined_call_operand.hbm [shape: f32[1,1], index: 11, kind: output, shape index: {}]
  %s12 = sld [smem:[#allocation0]]
  $region73: #{tpu_custom_call.1} parent=0
    _
  %s14 = ssub.s32 1, %s12
  %s15 = scalar_select 0, %s14, %s12
  %16 = sst [smem:[#allocation4]] %s10
  $region1: #{tpu_custom_call.1} parent=0
    #allocation5 [shape = 'u8[512]{0}', space=smem, size = 0x200, scoped, tag = 'input window, operand 0, single buffered']
    #allocation6 [shape = 's32[1]{0}', space=sflag, size = 0x4, scoped, tag = 'scoped memory for tpu_custom_call.1']
    #allocation7 [shape = 's32[1]{0}', space=sflag, size = 0x4, scoped, tag = 'scoped memory for tpu_custom_call.1']
    #allocation8 [shape = 's32[1]{0}', space=sflag, size = 0x4, scoped, tag = 'scoped memory for tpu_custom_call.1']
    #allocation9 [shape = 'u8[512]{0}', space=smem, size = 0x200, scoped, tag = 'input window, operand 1, single buffered']
    #allocation10 [shape = 's32[1]{0}', space=sflag, size = 0x4, scoped, tag = 'scoped memory for tpu_custom_call.1']
    #allocation11 [shape = 'u8[65536]{0}', space=vmem, size = 0x10000, scoped, tag = 'input window, operand 7, single buffered']
    #allocation12 [shape = 'u8[512]{0}', space=smem, size = 0x200, scoped, tag = 'output window, operand 0, single buffered']
    %17 = vsyncpa [#allocation8], 0
    %18 = vsyncpa [#allocation10], 0
    %19 = vsyncpa [#allocation6], 0
    %20 = vsyncpa [#allocation7], 0
    // Predicated region
    $region2: #{tpu_custom_call.1} parent=1 // pred_check
      _
    $region3: #{tpu_custom_call.1} parent=1 // pred_check_branch
      %22 = sbr.rel (0) target = $region5
    $region4: #{tpu_custom_call.1} parent=1 // pred_region
      %s24 = ssub.s32 16, 16
      %25 = vsyncadd [#allocation8], %s24
      %s27 = sshll.u32 %s0, 4
      %s28 = int_to_ptr.vmem [resolvable:$true] %s27
      %30 = dma.vmem_to_smem %s28, 16, [#allocation5], [#allocation8]
    $region5: #{tpu_custom_call.1} parent=1 // pred_fallthru
      _
    // Predicated region
    $region6: #{tpu_custom_call.1} parent=1 // pred_check
      _
    $region7: #{tpu_custom_call.1} parent=1 // pred_check_branch
      %32 = sbr.rel (0) target = $region9
    $region8: #{tpu_custom_call.1} parent=1 // pred_region
      %s34 = ssub.s32 16, 16
      %35 = vsyncadd [#allocation10], %s34
      %s37 = sshll.u32 %s1, 4
      %s38 = int_to_ptr.vmem [resolvable:$true] %s37
      %40 = dma.vmem_to_smem %s38, 16, [#allocation9], [#allocation10]
    $region9: #{tpu_custom_call.1} parent=1 // pred_fallthru
      _
    // Predicated region
    $region10: #{tpu_custom_call.1} parent=1 // pred_check
      _
    $region11: #{tpu_custom_call.1} parent=1 // pred_check_branch
      %42 = sbr.rel (0) target = $region13
    $region12: #{tpu_custom_call.1} parent=1 // pred_region
      _
    $region13: #{tpu_custom_call.1} parent=1 // pred_fallthru
      _
    // Predicated region
    $region14: #{tpu_custom_call.1} parent=1 // pred_check
      _
    $region15: #{tpu_custom_call.1} parent=1 // pred_check_branch
      %44 = sbr.rel (0) target = $region17
    $region16: #{tpu_custom_call.1} parent=1 // pred_region
      _
    $region17: #{tpu_custom_call.1} parent=1 // pred_fallthru
      _
    // Predicated region
    $region18: #{tpu_custom_call.1} parent=1 // pred_check
      _
    $region19: #{tpu_custom_call.1} parent=1 // pred_check_branch
      %46 = sbr.rel (0) target = $region21
    $region20: #{tpu_custom_call.1} parent=1 // pred_region
      _
    $region21: #{tpu_custom_call.1} parent=1 // pred_fallthru
      _
    // Predicated region
    $region22: #{tpu_custom_call.1} parent=1 // pred_check
      _
    $region23: #{tpu_custom_call.1} parent=1 // pred_check_branch
      %48 = sbr.rel (0) target = $region25
    $region24: #{tpu_custom_call.1} parent=1 // pred_region
      _
    $region25: #{tpu_custom_call.1} parent=1 // pred_fallthru
      _
    // Predicated region
    $region26: #{tpu_custom_call.1} parent=1 // pred_check
      _
    $region27: #{tpu_custom_call.1} parent=1 // pred_check_branch
      %50 = sbr.rel (0) target = $region29
    $region28: #{tpu_custom_call.1} parent=1 // pred_region
      _
    $region29: #{tpu_custom_call.1} parent=1 // pred_fallthru
      _
    // Predicated region
    $region30: #{tpu_custom_call.1} parent=1 // pred_check
      _
    $region31: #{tpu_custom_call.1} parent=1 // pred_check_branch
      %52 = sbr.rel (0) target = $region33
    $region32: #{tpu_custom_call.1} parent=1 // pred_region
      %s54 = ssub.s32 2048, 2048
      %55 = vsyncadd [#allocation6], %s54
      %s56 = sshll.u32 [#allocation11], 4
      %s57 = int_to_ptr.vmem [resolvable:$true] %s56
      %62 = dma.hbm_to_vmem [thread:$0]  %s7, 2048, %s57, [#allocation6], 128, 128, 8
    $region33: #{tpu_custom_call.1} parent=1 // pred_fallthru
      _
    // Predicated region
    $region34: #{tpu_custom_call.1} parent=1 // pred_check
      _
    $region35: #{tpu_custom_call.1} parent=1 // pred_check_branch
      %64 = sbr.rel (0) target = $region37
    $region36: #{tpu_custom_call.1} parent=1 // pred_region
      _
    $region37: #{tpu_custom_call.1} parent=1 // pred_fallthru
      _
    // Predicated region
    $region38: #{tpu_custom_call.1} parent=1 // pred_check
      _
    $region39: #{tpu_custom_call.1} parent=1 // pred_check_branch
      %66 = sbr.rel (0) target = $region41
    $region40: #{tpu_custom_call.1} parent=1 // pred_region
      _
    $region41: #{tpu_custom_call.1} parent=1 // pred_fallthru
      _
    // Predicated region
    $region42: #{tpu_custom_call.1} parent=1 // pred_check
      _
    $region43: #{tpu_custom_call.1} parent=1 // pred_check_branch
      %68 = sbr.rel (0) target = $region45
    $region44: #{tpu_custom_call.1} parent=1 // pred_region
      _
    $region45: #{tpu_custom_call.1} parent=1 // pred_fallthru
      _
    // Predicated region
    $region46: #{tpu_custom_call.1} parent=1 // pred_check
      _
    $region47: #{tpu_custom_call.1} parent=1 // pred_check_branch
      %70 = sbr.rel (0) target = $region49
    $region48: #{tpu_custom_call.1} parent=1 // pred_region
      %71 = dma.done [#allocation8], 16
    $region49: #{tpu_custom_call.1} parent=1 // pred_fallthru
      _
    // Predicated region
    $region50: #{tpu_custom_call.1} parent=1 // pred_check
      _
    $region51: #{tpu_custom_call.1} parent=1 // pred_check_branch
      %73 = sbr.rel (0) target = $region53
    $region52: #{tpu_custom_call.1} parent=1 // pred_region
      %74 = dma.done [#allocation10], 16
    $region53: #{tpu_custom_call.1} parent=1 // pred_fallthru
      _
    // Predicated region
    $region54: #{tpu_custom_call.1} parent=1 // pred_check
      _
    $region55: #{tpu_custom_call.1} parent=1 // pred_check_branch
      %76 = sbr.rel (0) target = $region57
    $region56: #{tpu_custom_call.1} parent=1 // pred_region
      %77 = dma.done [#allocation6], 2048
    $region57: #{tpu_custom_call.1} parent=1 // pred_fallthru
      _
    %78 = sfence
    %v79 = vld [vmem:[%s2] sm:$0xff]
    %vm80 = vcmask 31744
    %81 = vst.msk [vmem:[#allocation2] sm:$0xff] %vm80, %v79
    %v82 = vld [vmem:[%s3] sm:$0xff]
    %83 = vst.msk [vmem:[#allocation3] sm:$0xff] %vm80, %v82
    loop: start=0, step=1, limit=8
    $region58: #{tpu_custom_call.1} parent=1 // loop_pre_header
      _
    $region59: #{tpu_custom_call.1} parent=1 // loop_header
      %s85 = sphi 0, %s89
      %p86 = scmp.ge.s32.totalorder %s85, 8
    $region60: #{tpu_custom_call.1} parent=1 // loop_header_branch
      %88 = sbr.rel (%p86) target = $region64
    $region61: #{tpu_custom_call.1} parent=1 // loop_body
      %s90 = sld [smem:[#allocation5 + %s85]]
      %s91 = sld [smem:[#allocation9 + %s85]]
      %s92 = scalar_lea.vmem %s2, %s90
      %v93 = vld [vmem:[%s92] sm:$0x1]
      %s94 = sadd.s32 %s85, 8
      %s95 = scalar_lea.vmem [#allocation2], %s94
      %vm96 = vcmask 24576
      %97 = vst.msk [vmem:[%s95] sm:$0x1] %vm96, %v93
      %s98 = scalar_lea.vmem %s3, %s91
      %v99 = vld [vmem:[%s98] sm:$0x1]
      %s100 = scalar_lea.vmem [#allocation3], %s94
      %101 = vst.msk [vmem:[%s100] sm:$0x1] %vm96, %v99
    $region62: #{tpu_custom_call.1} parent=1 // loop_footer
      %s89 = sadd.s32 1, %s85
    $region63: #{tpu_custom_call.1} parent=1 // loop_footer_branch
      %84 = sbr.rel target = $region59
    $region64: #{tpu_custom_call.1} parent=1 // loop_exit
      _
    %v102 = vld [vmem:[#allocation2] sm:$0xff]
    %v103 = vld [vmem:[#allocation2 + $0x8] sm:$0xff]
    %v104 = vld [vmem:[#allocation3] sm:$0xff]
    %v105 = vld [vmem:[#allocation3 + $0x8] sm:$0xff]
    %v106 = vld [vmem:[%s4] sm:$0xf]
    %v107 = vld [vmem:[%s5] sm:$0xf]
    %v109 = vsel %vm80, %v104, 0
    %v112 = vsel %vm80, %v105, 0
    %vm114 = vcmask 1043456
    %v116 = vsel %vm114, %v107, 0
    %118 = vmatprep.subr.mxu0 0.0
    %119 = vmatpush1.msra.mxu0 0.0
    %120 = vmatprep.subr.mxu0 0.0
    %121 = vmatpush1.msra.mxu0 0.0
    %122 = vmatprep.subr.mxu0 0.0
    %123 = vmatpush1.msra.mxu0 0.0
    %124 = vmatprep.subr.mxu0 0.0
    %125 = vmatpush1.msra.mxu0 0.0
    %126 = vmatprep.subr.mxu0 0.0
    %127 = vmatpush1.msra.mxu0 0.0
    %128 = vmatprep.subr.mxu0 0.0
    %129 = vmatpush1.msra.mxu0 0.0
    %130 = vmatprep.subr.mxu0 0.0
    %131 = vmatpush1.msra.mxu0 0.0
    %132 = vmatprep.subr.mxu0 0.0
    %133 = vmatpush1.msra.mxu0 0.0
    %134 = vmatprep.subr.mxu0 0.0
    %135 = vmatpush1.msra.mxu0 0.0
    %136 = vmatprep.subr.mxu0 0.0
    %137 = vmatpush1.msra.mxu0 0.0
    %138 = vmatprep.subr.mxu0 0.0
    %139 = vmatpush1.msra.mxu0 0.0
    %140 = vmatprep.subr.mxu0 0.0
    %141 = vmatpush1.msra.mxu0 0.0
    %142 = vmatprep.subr.mxu0 0.0
    %143 = vmatpush1.msra.mxu0 0.0
    %144 = vmatprep.subr.mxu0 0.0
    %145 = vmatpush1.msra.mxu0 0.0
    %146 = vmatprep.subr.mxu0 0.0
    %147 = vmatpush1.msra.mxu0 0.0
    %148 = vmatprep.subr.mxu0 0.0
    %149 = vmatpush1.msra.mxu0 %v116
    %150 = vmatprep.subr.mxu0 0.0
    %151 = vmatpush2.msra.mxu0 0.0
    %152 = vmatprep.subr.mxu0 0.0
    %153 = vmatpush2.msra.mxu0 0.0
    %154 = vmatprep.subr.mxu0 0.0
    %155 = vmatpush2.msra.mxu0 0.0
    %156 = vmatprep.subr.mxu0 0.0
    %157 = vmatpush2.msra.mxu0 0.0
    %158 = vmatprep.subr.mxu0 0.0
    %159 = vmatpush2.msra.mxu0 0.0
    %160 = vmatprep.subr.mxu0 0.0
    %161 = vmatpush2.msra.mxu0 0.0
    %162 = vmatprep.subr.mxu0 0.0
    %163 = vmatpush2.msra.mxu0 0.0
    %164 = vmatprep.subr.mxu0 0.0
    %165 = vmatpush2.msra.mxu0 0.0
    %166 = vmatprep.subr.mxu0 0.0
    %167 = vmatpush2.msra.mxu0 0.0
    %168 = vmatprep.subr.mxu0 0.0
    %169 = vmatpush2.msra.mxu0 0.0
    %170 = vmatprep.subr.mxu0 0.0
    %171 = vmatpush2.msra.mxu0 0.0
    %172 = vmatprep.subr.mxu0 0.0
    %173 = vmatpush2.msra.mxu0 0.0
    %174 = vmatprep.subr.mxu0 0.0
    %175 = vmatpush2.msra.mxu0 0.0
    %176 = vmatprep.subr.mxu0 0.0
    %177 = vmatpush2.msra.mxu0 0.0
    %178 = vmatprep.subr.mxu0 0.0
    %179 = vmatpush2.msra.mxu0 0.0
    %180 = vmatprep.subr.mxu0 0.0
    %181 = vmatpush2.msra.mxu0 0.0
    %182 = vmatprep.mubr.f32.mxu0 0.0
    %183 = vmatmul.mubr.f32.gmra.mxu0 %v109
    %v184 = vpop.f32.mrf.mxu0
    %v185 = vadd.f32 0.0, %v184
    %v186 = vpop.f32.mrf.mxu0
    %187 = vmatprep.mubr.f32.mxu0 0.0
    %188 = vmatmul.mubr.f32.gmra.mxu0 %v112
    %v189 = vpop.f32.mrf.mxu0
    %v190 = vadd.f32 0.0, %v189
    %v191 = vpop.f32.mrf.mxu0
    %192 = vdwg.mxu0
    %v194 = vsel %vm80, %v102, 0
    %v197 = vsel %vm80, %v103, 0
    %v200 = vsel %vm114, %v106, 0
    %202 = vmatprep.subr.mxu0 0.0
    %203 = vmatpush1.msra.mxu0 0.0
    %204 = vmatprep.subr.mxu0 0.0
    %205 = vmatpush1.msra.mxu0 0.0
    %206 = vmatprep.subr.mxu0 0.0
    %207 = vmatpush1.msra.mxu0 0.0
    %208 = vmatprep.subr.mxu0 0.0
    %209 = vmatpush1.msra.mxu0 0.0
    %210 = vmatprep.subr.mxu0 0.0
    %211 = vmatpush1.msra.mxu0 0.0
    %212 = vmatprep.subr.mxu0 0.0
    %213 = vmatpush1.msra.mxu0 0.0
    %214 = vmatprep.subr.mxu0 0.0
    %215 = vmatpush1.msra.mxu0 0.0
    %216 = vmatprep.subr.mxu0 0.0
    %217 = vmatpush1.msra.mxu0 0.0
    %218 = vmatprep.subr.mxu0 0.0
    %219 = vmatpush1.msra.mxu0 0.0
    %220 = vmatprep.subr.mxu0 0.0
    %221 = vmatpush1.msra.mxu0 0.0
    %222 = vmatprep.subr.mxu0 0.0
    %223 = vmatpush1.msra.mxu0 0.0
    %224 = vmatprep.subr.mxu0 0.0
    %225 = vmatpush1.msra.mxu0 0.0
    %226 = vmatprep.subr.mxu0 0.0
    %227 = vmatpush1.msra.mxu0 0.0
    %228 = vmatprep.subr.mxu0 0.0
    %229 = vmatpush1.msra.mxu0 0.0
    %230 = vmatprep.subr.mxu0 0.0
    %231 = vmatpush1.msra.mxu0 0.0
    %232 = vmatprep.subr.mxu0 0.0
    %233 = vmatpush1.msra.mxu0 %v200
    %234 = vmatprep.subr.mxu0 0.0
    %235 = vmatpush2.msra.mxu0 0.0
    %236 = vmatprep.subr.mxu0 0.0
    %237 = vmatpush2.msra.mxu0 0.0
    %238 = vmatprep.subr.mxu0 0.0
    %239 = vmatpush2.msra.mxu0 0.0
    %240 = vmatprep.subr.mxu0 0.0
    %241 = vmatpush2.msra.mxu0 0.0
    %242 = vmatprep.subr.mxu0 0.0
    %243 = vmatpush2.msra.mxu0 0.0
    %244 = vmatprep.subr.mxu0 0.0
    %245 = vmatpush2.msra.mxu0 0.0
    %246 = vmatprep.subr.mxu0 0.0
    %247 = vmatpush2.msra.mxu0 0.0
    %248 = vmatprep.subr.mxu0 0.0
    %249 = vmatpush2.msra.mxu0 0.0
    %250 = vmatprep.subr.mxu0 0.0
    %251 = vmatpush2.msra.mxu0 0.0
    %252 = vmatprep.subr.mxu0 0.0
    %253 = vmatpush2.msra.mxu0 0.0
    %254 = vmatprep.subr.mxu0 0.0
    %255 = vmatpush2.msra.mxu0 0.0
    %256 = vmatprep.subr.mxu0 0.0
    %257 = vmatpush2.msra.mxu0 0.0
    %258 = vmatprep.subr.mxu0 0.0
    %259 = vmatpush2.msra.mxu0 0.0
    %260 = vmatprep.subr.mxu0 0.0
    %261 = vmatpush2.msra.mxu0 0.0
    %262 = vmatprep.subr.mxu0 0.0
    %263 = vmatpush2.msra.mxu0 0.0
    %264 = vmatprep.subr.mxu0 0.0
    %265 = vmatpush2.msra.mxu0 0.0
    %266 = vmatprep.mubr.f32.mxu0 0.0
    %267 = vmatmul.mubr.f32.gmra.mxu0 %v194
    %v268 = vpop.f32.mrf.mxu0
    %v269 = vadd.f32 %v185, %v268
    %v270 = vpop.f32.mrf.mxu0
    %271 = vmatprep.mubr.f32.mxu0 0.0
    %272 = vmatmul.mubr.f32.gmra.mxu0 %v197
    %v273 = vpop.f32.mrf.mxu0
    %v274 = vadd.f32 %v190, %v273
    %v275 = vpop.f32.mrf.mxu0
    %276 = vdwg.mxu0
    %v277 = vld [vmem:[%s6] sm:$0x1]
    %v279 = vlaneseq
    %v280 = vshrl.u32 %v279, 7
    %v281 = vsub.s32 0, %v280
    %v282 = vrot.slane %v277, %v281
    %v284 = vadd.f32 %v269, %v282
    %v285 = vadd.f32 %v274, %v282
    %vm286 = vcmp.gt.f32.partialorder %v284, 0.0
    %vm287 = vcmp.gt.f32.partialorder %v285, 0.0
    %v288 = vmin.f32 %v284, 0.0
    %v289 = vmin.f32 %v285, 0.0
    %v290 = vmul.f32 %v288, 1.442695
    %v291 = vpow.pop %v290
    %v292 = vmul.f32 %v289, 1.442695
    %v293 = vpow.pop %v292
    %v294 = vsub.f32 %v291, 1.0
    %v295 = vsub.f32 %v293, 1.0
    %v296 = vsel %vm286, %v284, %v294
    %v297 = vsel %vm287, %v285, %v295
    %v298 = vld [vmem:[#allocation11] sm:$0xff]
    %v299 = vld [vmem:[#allocation11 + $0x8] sm:$0xff]
    %v300 = vld [vmem:[#allocation11 + $0x10] sm:$0xff]
    %v301 = vld [vmem:[#allocation11 + $0x18] sm:$0xff]
    %v302 = vld [vmem:[#allocation11 + $0x20] sm:$0xff]
    %v303 = vld [vmem:[#allocation11 + $0x28] sm:$0xff]
    %v304 = vld [vmem:[#allocation11 + $0x30] sm:$0xff]
    %v305 = vld [vmem:[#allocation11 + $0x38] sm:$0xff]
    %v306 = vld [vmem:[#allocation11 + $0x40] sm:$0xff]
    %v307 = vld [vmem:[#allocation11 + $0x48] sm:$0xff]
    %v308 = vld [vmem:[#allocation11 + $0x50] sm:$0xff]
    %v309 = vld [vmem:[#allocation11 + $0x58] sm:$0xff]
    %v310 = vld [vmem:[#allocation11 + $0x60] sm:$0xff]
    %v311 = vld [vmem:[#allocation11 + $0x68] sm:$0xff]
    %v312 = vld [vmem:[#allocation11 + $0x70] sm:$0xff]
    %v313 = vld [vmem:[#allocation11 + $0x78] sm:$0xff]
    %v314 = vld [vmem:[%s8] sm:$0x1]
    %v316 = vlaneseq
    %v317 = vshrl.u32 %v316, 7
    %v318 = vsub.s32 0, %v317
    %v319 = vrot.slane %v314, %v318
    %321 = vmatprep.subr.mxu0 0.0
    %322 = vmatpush1.msra.mxu0 %v313
    %323 = vmatprep.subr.mxu0 0.0
    %324 = vmatpush1.msra.mxu0 %v312
    %325 = vmatprep.subr.mxu0 0.0
    %326 = vmatpush1.msra.mxu0 %v311
    %327 = vmatprep.subr.mxu0 0.0
    %328 = vmatpush1.msra.mxu0 %v310
    %329 = vmatprep.subr.mxu0 0.0
    %330 = vmatpush1.msra.mxu0 %v309
    %331 = vmatprep.subr.mxu0 0.0
    %332 = vmatpush1.msra.mxu0 %v308
    %333 = vmatprep.subr.mxu0 0.0
    %334 = vmatpush1.msra.mxu0 %v307
    %335 = vmatprep.subr.mxu0 0.0
    %336 = vmatpush1.msra.mxu0 %v306
    %337 = vmatprep.subr.mxu0 0.0
    %338 = vmatpush1.msra.mxu0 %v305
    %339 = vmatprep.subr.mxu0 0.0
    %340 = vmatpush1.msra.mxu0 %v304
    %341 = vmatprep.subr.mxu0 0.0
    %342 = vmatpush1.msra.mxu0 %v303
    %343 = vmatprep.subr.mxu0 0.0
    %344 = vmatpush1.msra.mxu0 %v302
    %345 = vmatprep.subr.mxu0 0.0
    %346 = vmatpush1.msra.mxu0 %v301
    %347 = vmatprep.subr.mxu0 0.0
    %348 = vmatpush1.msra.mxu0 %v300
    %349 = vmatprep.subr.mxu0 0.0
    %350 = vmatpush1.msra.mxu0 %v299
    %351 = vmatprep.subr.mxu0 0.0
    %352 = vmatpush1.msra.mxu0 %v298
    %353 = vmatprep.subr.mxu0 0.0
    %354 = vmatpush2.msra.mxu0 0.0
    %355 = vmatprep.subr.mxu0 0.0
    %356 = vmatpush2.msra.mxu0 0.0
    %357 = vmatprep.subr.mxu0 0.0
    %358 = vmatpush2.msra.mxu0 0.0
    %359 = vmatprep.subr.mxu0 0.0
    %360 = vmatpush2.msra.mxu0 0.0
    %361 = vmatprep.subr.mxu0 0.0
    %362 = vmatpush2.msra.mxu0 0.0
    %363 = vmatprep.subr.mxu0 0.0
    %364 = vmatpush2.msra.mxu0 0.0
    %365 = vmatprep.subr.mxu0 0.0
    %366 = vmatpush2.msra.mxu0 0.0
    %367 = vmatprep.subr.mxu0 0.0
    %368 = vmatpush2.msra.mxu0 0.0
    %369 = vmatprep.subr.mxu0 0.0
    %370 = vmatpush2.msra.mxu0 0.0
    %371 = vmatprep.subr.mxu0 0.0
    %372 = vmatpush2.msra.mxu0 0.0
    %373 = vmatprep.subr.mxu0 0.0
    %374 = vmatpush2.msra.mxu0 0.0
    %375 = vmatprep.subr.mxu0 0.0
    %376 = vmatpush2.msra.mxu0 0.0
    %377 = vmatprep.subr.mxu0 0.0
    %378 = vmatpush2.msra.mxu0 0.0
    %379 = vmatprep.subr.mxu0 0.0
    %380 = vmatpush2.msra.mxu0 0.0
    %381 = vmatprep.subr.mxu0 0.0
    %382 = vmatpush2.msra.mxu0 0.0
    %383 = vmatprep.subr.mxu0 0.0
    %384 = vmatpush2.msra.mxu0 0.0
    %385 = vmatprep.mubr.f32.mxu0 0.0
    %386 = vmatmul.mubr.f32.gmra.mxu0 %v296
    %v387 = vpop.f32.mrf.mxu0
    %v388 = vadd.f32 %v319, %v387
    %v389 = vpop.f32.mrf.mxu0
    %390 = vmatprep.mubr.f32.mxu0 0.0
    %391 = vmatmul.mubr.f32.gmra.mxu0 %v297
    %v392 = vpop.f32.mrf.mxu0
    %v393 = vadd.f32 %v319, %v392
    %v394 = vpop.f32.mrf.mxu0
    %395 = vdwg.mxu0
    %vm396 = vcmp.gt.f32.partialorder %v388, 0.0
    %vm397 = vcmp.gt.f32.partialorder %v393, 0.0
    %v398 = vmin.f32 %v388, 0.0
    %v399 = vmin.f32 %v393, 0.0
    %v400 = vmul.f32 %v398, 1.442695
    %v401 = vpow.pop %v400
    %v402 = vmul.f32 %v399, 1.442695
    %v403 = vpow.pop %v402
    %v404 = vsub.f32 %v401, 1.0
    %v405 = vsub.f32 %v403, 1.0
    %v406 = vsel %vm396, %v388, %v404
    %v407 = vsel %vm397, %v393, %v405
    %v408 = vld [vmem:[%s9] sm:$0x1]
    %v410 = vlaneseq
    %v411 = vshrl.u32 %v410, 7
    %v412 = vsub.s32 0, %v411
    %v413 = vrot.slane %v408, %v412
    %v415 = vmul.f32 %v406, %v413
    %v416 = vmul.f32 %v407, %v413
    %417 = vadd.xlane.f32.xlu0 %v415
    %v418 = vpop.xlane.xlu0 %417
    %419 = vadd.xlane.f32.xlu0 %v416
    %v420 = vpop.xlane.xlu0 %419
    %s421 = sld [smem:[#allocation4]]
    %v422 = vstv %s421
    %v423 = vadd.f32 %v418, %v422
    %v424 = vadd.f32 %v420, %v422
    %v425 = vlaneseq
    %v426 = vshrl.u32 %v425, 7
    %v427 = vadd.s32 %v426, 8
    %vm428 = vcmp.lt.s32.totalorder %v426, 8
    %vm429 = vcmp.lt.s32.totalorder %v427, 8
    %v430 = vsel %vm428, 1, 0
    %v431 = vsel %vm429, 1, 0
    %v432 = vcvt.s32.f32 %v430
    %v433 = vcvt.s32.f32 %v431
    %v434 = vxor.u32 %v423, 2147483648
    %v435 = vxor.u32 %v424, 2147483648
    %v436 = vmul.f32 %v434, 1.442695
    %v437 = vpow.pop %v436
    %v438 = vmul.f32 %v435, 1.442695
    %v439 = vpow.pop %v438
    %v440 = vadd.f32 %v437, 1.0
    %v441 = vadd.f32 %v439, 1.0
    %v442 = vrcp.pop %v440
    %v443 = vmul.f32 1.0, %v442
    %v444 = vrcp.pop %v441
    %v445 = vmul.f32 1.0, %v444
    %vm446 = vcmp.le.f32.partialorder %v443, 0.2
    %vm447 = vcmp.le.f32.partialorder %v445, 0.2
    %v448 = vmul.f32 %v443, -0.1
    %v449 = vmul.f32 %v445, -0.1
    %v450 = vrcp.pop 0.2
    %v451 = vmul.f32 %v448, %v450
    %v452 = vmul.f32 %v449, %v450
    %v453 = vadd.f32 %v451, 0.1
    %v454 = vadd.f32 %v452, 0.1
    %vm455 = vcmp.ge.f32.partialorder %v443, 0.8
    %vm456 = vcmp.ge.f32.partialorder %v445, 0.8
    %v457 = vmul.f32 %v443, 0.1
    %v458 = vmul.f32 %v445, 0.1
    %v459 = vmul.f32 %v457, %v450
    %v460 = vmul.f32 %v458, %v450
    %v461 = vadd.f32 %v459, -0.4
    %v462 = vadd.f32 %v460, -0.4
    %v463 = vsel %vm455, %v461, 0.0
    %v464 = vsel %vm456, %v462, 0.0
    %v465 = vsel %vm446, %v453, %v463
    %v466 = vsel %vm447, %v454, %v464
    %v467 = vsub.f32 1.0, %v465
    %v468 = vsub.f32 1.0, %v466
    %v469 = vmul.f32 %v467, %v432
    %v470 = vmul.f32 %v468, %v433
    %v471 = vmul.f32 %v465, 0.5
    %v472 = vmul.f32 %v466, 0.5
    %v473 = vadd.f32 %v469, %v471
    %v474 = vadd.f32 %v470, %v472
    %v475 = vlog2.pop %v443
    %v476 = vmul.f32 %v475, 0.6931472
    %v477 = vlog2.pop %v445
    %v478 = vmul.f32 %v477, 0.6931472
    %v479 = vmax.f32 %v476, -100.0
    %v480 = vmax.f32 %v478, -100.0
    %v481 = vsub.f32 1.0, %v443
    %v482 = vsub.f32 1.0, %v445
    %v483 = vlog2.pop %v481
    %v484 = vmul.f32 %v483, 0.6931472
    %v485 = vlog2.pop %v482
    %v486 = vmul.f32 %v485, 0.6931472
    %v487 = vmax.f32 %v484, -100.0
    %v488 = vmax.f32 %v486, -100.0
    %v489 = vmul.f32 %v473, %v479
    %v490 = vmul.f32 %v474, %v480
    %v491 = vsub.f32 1.0, %v473
    %v492 = vsub.f32 1.0, %v474
    %v493 = vmul.f32 %v491, %v487
    %v494 = vmul.f32 %v492, %v488
    %v495 = vadd.f32 %v489, %v493
    %v496 = vadd.f32 %v490, %v494
    %v497 = vsub.f32 0.0, %v495
    %v498 = vsub.f32 0.0, %v496
    %vm499 = vcmask 7168
    %v500 = vsel %vm499, %v497, 0.0
    %v501 = vsel %vm499, %v498, 0.0
    %v502 = vadd.f32 %v500, %v501
    %503 = vadd.xlane.f32.xlu0 %v502
    %v504 = vpop.xlane.xlu0 %503
    %v505 = vrot.slane %v504, 4
    %v506 = vadd.f32 %v504, %v505
    %v507 = vrot.slane %v506, 2
    %v508 = vadd.f32 %v506, %v507
    %v509 = vrot.slane %v508, 1
    %v510 = vadd.f32 %v508, %v509
    %s511 = vtos %v510
    %s512 = smul.f32 %s511, 0.0625
    %s513 = scalar_lea.smem [#allocation12], 0
    %514 = sst [smem:[%s513]] %s512
    // Predicated region
    $region65: #{tpu_custom_call.1} parent=1 // pred_check
      _
    $region66: #{tpu_custom_call.1} parent=1 // pred_check_branch
      %516 = sbr.rel (0) target = $region68
    $region67: #{tpu_custom_call.1} parent=1 // pred_region
      %s518 = ssub.s32 16, 16
      %519 = vsyncadd [#allocation7], %s518
      %522 = dma.smem_to_hbm [#allocation12], 16, %s11, [#allocation7]
    $region68: #{tpu_custom_call.1} parent=1 // pred_fallthru
      _
    // Predicated region
    $region69: #{tpu_custom_call.1} parent=1 // pred_check
      _
    $region70: #{tpu_custom_call.1} parent=1 // pred_check_branch
      %524 = sbr.rel (0) target = $region72
    $region71: #{tpu_custom_call.1} parent=1 // pred_region
      %525 = dma.done [#allocation7], 16
    $region72: #{tpu_custom_call.1} parent=1 // pred_fallthru
      _
    %526 = sfence
    %527 = vsyncpa [#allocation6], 1
    %528 = vsyncpa [#allocation7], 1
    %529 = vsyncpa [#allocation8], 1
    %530 = vsyncpa [#allocation10], 1

</llo_original>
